<compile_context>
chip_gen: v6e
topology: v6e:2x2x1
jax: 0.10.0
libtpu: 0.0.40
codegen_flags: <defaults>
</compile_context>

<pallas_src>
import functools
import math

import jax
import jax.numpy as jnp
from jax.experimental import pallas as pl
from jax.experimental.pallas import tpu as pltpu


def gat_kernel(s_l_ref, s_r_ref, g_ref, adj_ref, out_ref, m_ref, acc_ref, *,
               slope, n_heads, n_hidden, shared_adj):
    """One (row-tile, neighbour-tile) grid step of the GAT forward.

    s_l_ref : [H, TM, 1]      a_l . g_i for the rows of this tile
    s_r_ref : [H, 1, TN]      a_r . g_j for the neighbour columns of this tile
    g_ref   : [H, TN, Fh+1]   projected neighbours, last column == 1 (denominator)
    adj_ref : [H_a, TM, TN]   int8 0/1 adjacency block (H_a = 1 when shared)
    out_ref : [TM, H*Fh]      lane-dense output rows (written on the last col tile)
    m_ref   : [H, TM, 1]      scratch: running row max
    acc_ref : [H, TM, Fh+1]   scratch: running (unnormalized output | denom)
    """
    jt = pl.program_id(1)

    @pl.when(jt == 0)
    def _init():
        m_ref[...] = jnp.full(m_ref.shape, -1e30, m_ref.dtype)
        acc_ref[...] = jnp.zeros(acc_ref.shape, acc_ref.dtype)

    for h in range(n_heads):
        mask = adj_ref[0 if shared_adj else h].astype(jnp.float32)        # [TM, TN]
        # e[i, j] = leaky_relu(a_l . g_i + a_r . g_j): pure VPU broadcast-add.
        e = s_l_ref[h] + s_r_ref[h]                                        # [TM, TN]
        e = jnp.where(e >= 0.0, e, slope * e)

        # Online (streaming) masked softmax: multiply the 0/1 mask after exp,
        # so non-edges contribute exactly zero and there is no -inf arithmetic.
        m_old = m_ref[h]                                                   # [TM, 1]
        m_new = jnp.maximum(m_old, jnp.max(e, axis=-1, keepdims=True))
        alpha = jnp.exp(m_old - m_new)                                     # [TM, 1]
        p = jnp.exp(e - m_new) * mask                                      # [TM, TN]

        # Aggregation + denominator in ONE MXU matmul (ones column of g_aug).
        part = jnp.dot(p, g_ref[h], preferred_element_type=jnp.float32)    # [TM, Fh+1]
        acc_ref[h] = alpha * acc_ref[h] + part
        m_ref[h] = m_new

    @pl.when(jt == pl.num_programs(1) - 1)
    def _finalize():
        outs = []
        for h in range(n_heads):
            acc = acc_ref[h]                                               # [TM, Fh+1]
            denom = jnp.maximum(acc[:, n_hidden:n_hidden + 1], 1e-20)      # isolated-node guard
            inv = pl.reciprocal(denom, approx=True)
            inv = inv * (2.0 - denom * inv)        # one Newton step -> f32 accuracy
            outs.append(acc[:, :n_hidden] * inv)
        # One lane-dense store of the whole (TM, H*Fh) row-tile block.
        out_ref[...] = jnp.concatenate(outs, axis=-1).astype(out_ref.dtype)


def _vmem_limit_bytes():
    """Per-generation VMEM budget (v7x has 64 MiB, v5e/v6e 128 MiB)."""
    cap = 64 * 1024 * 1024
    try:
        info = pltpu.get_tpu_info()
        cap = int(getattr(info, "vmem_capacity_bytes", cap))
    except Exception:
        pass
    return int(min(cap * 3 // 4, 100 * 1024 * 1024))


def _plan(n, row_tile=None, col_tile=None):
    """Pick (padded N, row tile, col tile).

    Row tiles are kept multiples of 32 and col tiles multiples of 128 (int8
    adjacency packing); small graphs use full-extent blocks (no padding).
    """
    if row_tile is None and col_tile is None:
        if n <= 512:
            return n, n, n
        n_pad = -(-n // 128) * 128
        tn = 512 if n_pad % 512 == 0 else (256 if n_pad % 256 == 0 else 128)
        tm = 256 if n_pad % 256 == 0 else 128
        return n_pad, tm, tn
    tm = row_tile if row_tile is not None else min(n, 128)
    tn = col_tile if col_tile is not None else min(n, 128)
    m = math.lcm(tm, tn)
    n_pad = -(-n // m) * m
    return n_pad, tm, tn


def graph_attention_layer(h, A, w, a_l, a_r, *, n_heads, n_hidden,
                          leaky_relu_negative_slope=0.2, is_concat=True,
                          row_tile=None, col_tile=None):
    """GAT forward: O(N*F) layout/projection in XLA, O(N^2) hot path in Pallas.

    h   : [N, F_in]
    A   : [N, N, 1] or [N, N, H] adjacency (nonzero = edge); leading-1 dims broadcast
    w   : [F_in, H*Fh]           projection weight (transposed nn.Linear weight)
    a_l : [H, Fh]                attention weights applied to g_i
    a_r : [H, Fh]                attention weights applied to g_j
    """
    n_nodes, f_in = h.shape
    H, Fh = n_heads, n_hidden
    assert w.shape == (f_in, H * Fh)
    assert a_l.shape == (H, Fh) and a_r.shape == (H, Fh)
    f32 = jnp.float32

    # ---- hoisted out of the kernel: projection + edge-score terms (once) ----
    g = (h.astype(f32) @ w.astype(f32)).reshape(n_nodes, H, Fh)            # [N, H, Fh]
    s_l = jnp.einsum('nhf,hf->hn', g, a_l.astype(f32))[..., None]          # [H, N, 1]
    s_r = jnp.einsum('nhf,hf->hn', g, a_r.astype(f32))[:, None, :]         # [H, 1, N]
    g_hnf = jnp.transpose(g, (1, 0, 2))                                     # [H, N, Fh]
    g_aug = jnp.concatenate([g_hnf, jnp.ones((H, n_nodes, 1), f32)], -1)    # [H, N, Fh+1]

    # Adjacency: single int8 copy (no head broadcast when shared).
    adj_heads = A.shape[2]
    assert adj_heads in (1, H)
    A = jnp.broadcast_to(A, (n_nodes, n_nodes, adj_heads))
    adj = (jnp.transpose(A, (2, 0, 1)) != 0).astype(jnp.int8)               # [H_a, N, N]

    # ---- tile plan + padding so every DMA block is rectangular/unmasked ----
    n_pad, tm, tn = _plan(n_nodes, row_tile, col_tile)
    if n_pad != n_nodes:
        pad = n_pad - n_nodes
        s_l = jnp.pad(s_l, ((0, 0), (0, pad), (0, 0)))
        s_r = jnp.pad(s_r, ((0, 0), (0, 0), (0, pad)))
        g_aug = jnp.pad(g_aug, ((0, 0), (0, pad), (0, 0)))
        adj = jnp.pad(adj, ((0, 0), (0, pad), (0, pad)))   # padded edges are 0

    kernel = functools.partial(gat_kernel, slope=leaky_relu_negative_slope,
                               n_heads=H, n_hidden=Fh,
                               shared_adj=(adj_heads == 1))

    out = pl.pallas_call(
        kernel,
        out_shape=jax.ShapeDtypeStruct((n_pad, H * Fh), f32),
        grid=(n_pad // tm, n_pad // tn),
        in_specs=[
            pl.BlockSpec((H, tm, 1), lambda it, jt: (0, it, 0)),            # s_l rows
            pl.BlockSpec((H, 1, tn), lambda it, jt: (0, 0, jt)),            # s_r cols
            pl.BlockSpec((H, tn, Fh + 1), lambda it, jt: (0, jt, 0)),       # g_aug cols
            pl.BlockSpec((adj_heads, tm, tn), lambda it, jt: (0, it, jt)),  # adjacency
        ],
        out_specs=pl.BlockSpec((tm, H * Fh), lambda it, jt: (it, 0)),
        scratch_shapes=[
            pltpu.VMEM((H, tm, 1), f32),        # running max
            pltpu.VMEM((H, tm, Fh + 1), f32),   # running (acc | denom)
        ],
        compiler_params=pltpu.CompilerParams(
            dimension_semantics=("parallel", "arbitrary"),
            vmem_limit_bytes=_vmem_limit_bytes(),
        ),
    )(s_l, s_r, g_aug, adj)

    out = out[:n_nodes]
    if is_concat:
        return out
    return jnp.mean(out.reshape(n_nodes, H, Fh), axis=1)


def gat_reference(h, A, w, a_l, a_r, *, n_heads, n_hidden, slope=0.2, is_concat=True):
    """Pure-JAX reference mirroring the PyTorch forward (eval mode, no dropout)."""
    n = h.shape[0]
    g = (h @ w).reshape(n, n_heads, n_hidden)
    s_l = jnp.einsum('ihf,hf->ih', g, a_l)
    s_r = jnp.einsum('jhf,hf->jh', g, a_r)
    e = s_l[:, None, :] + s_r[None, :, :]                    # [N, N, H]
    e = jnp.where(e >= 0, e, slope * e)
    mask = jnp.broadcast_to(A, (n, n, n_heads)) == 0
    e = jnp.where(mask, -jnp.inf, e)
    a = jax.nn.softmax(e, axis=1)
    res = jnp.einsum('ijh,jhf->ihf', a, g)
    if is_concat:
        return res.reshape(n, n_heads * n_hidden)
    return res.mean(axis=1)


def _make_problem(key, n, f_in, n_heads, fh, adj_heads, edge_p=0.5):
    k_h, k_w, k_a, k_adj = jax.random.split(key, 4)
    h = jax.random.normal(k_h, (n, f_in), dtype=jnp.float32)

    # nn.Linear(f_in, H*fh, bias=False): weight [H*fh, f_in]; y = x @ W.T
    bound_w = 1.0 / jnp.sqrt(f_in)
    w_torch = jax.random.uniform(k_w, (n_heads * fh, f_in), minval=-bound_w,
                                 maxval=bound_w, dtype=jnp.float32)
    w = w_torch.T                                             # [f_in, H*fh]

    # nn.Linear(2*fh, 1, bias=False): shared across heads (as in the module).
    bound_a = 1.0 / jnp.sqrt(2 * fh)
    attn_w = jax.random.uniform(k_a, (1, 2 * fh), minval=-bound_a,
                                maxval=bound_a, dtype=jnp.float32)
    a_l = jnp.broadcast_to(attn_w[0, :fh], (n_heads, fh)).astype(jnp.float32)
    a_r = jnp.broadcast_to(attn_w[0, fh:], (n_heads, fh)).astype(jnp.float32)

    # adjacency: random edges + guaranteed self-loops (avoids empty rows)
    adj_rand = (jax.random.uniform(k_adj, (n, n, adj_heads)) > edge_p).astype(jnp.float32)
    adj = jnp.maximum(adj_rand, jnp.eye(n, dtype=jnp.float32)[:, :, None])
    return h, adj, w, a_l, a_r


if __name__ == "__main__":
    key = jax.random.PRNGKey(0)
    k1, k2 = jax.random.split(key)
    SLOPE = 0.2

    # --- config 1: tiny graph, shared adjacency, single full-extent tile ---
    N1, F_IN1, H1, FH1 = 8, 16, 4, 8
    h1, adj1, w1, al1, ar1 = _make_problem(k1, N1, F_IN1, H1, FH1, adj_heads=1)

    out1 = graph_attention_layer(h1, adj1, w1, al1, ar1, n_heads=H1, n_hidden=FH1,
                                 leaky_relu_negative_slope=SLOPE, is_concat=True)
    out1 = jax.block_until_ready(out1)
    ref1 = gat_reference(h1, adj1, w1, al1, ar1, n_heads=H1, n_hidden=FH1,
                         slope=SLOPE, is_concat=True)
    assert out1.shape == (N1, H1 * FH1)
    assert jnp.allclose(out1, ref1, atol=1e-4, rtol=1e-4), "config-1 concat mismatch"

    out1m = graph_attention_layer(h1, adj1, w1, al1, ar1, n_heads=H1, n_hidden=FH1,
                                  leaky_relu_negative_slope=SLOPE, is_concat=False)
    out1m = jax.block_until_ready(out1m)
    ref1m = gat_reference(h1, adj1, w1, al1, ar1, n_heads=H1, n_hidden=FH1,
                          slope=SLOPE, is_concat=False)
    assert jnp.allclose(out1m, ref1m, atol=1e-4, rtol=1e-4), "config-1 mean mismatch"

    # --- config 2: per-head adjacency + forced row/col tiling (online softmax,
    #     padding, multi-tile neighbour axis) ---
    N2, F_IN2, H2, FH2 = 200, 24, 2, 16
    h2, adj2, w2, al2, ar2 = _make_problem(k2, N2, F_IN2, H2, FH2, adj_heads=H2,
                                           edge_p=0.6)
    out2 = graph_attention_layer(h2, adj2, w2, al2, ar2, n_heads=H2, n_hidden=FH2,
                                 leaky_relu_negative_slope=SLOPE, is_concat=True,
                                 row_tile=64, col_tile=128)
    out2 = jax.block_until_ready(out2)
    ref2 = gat_reference(h2, adj2, w2, al2, ar2, n_heads=H2, n_hidden=FH2,
                         slope=SLOPE, is_concat=True)
    assert out2.shape == (N2, H2 * FH2)
    assert jnp.allclose(out2, ref2, atol=2e-4, rtol=2e-4), "config-2 concat mismatch"

    print("KERNEL_OK")
</pallas_src>

<mosaic_0001>
module attributes {stable_mosaic.version = 11 : i64} {
  func.func @gat_kernel(%arg0: i32, %arg1: i32, %arg2: memref<4x8x1xf32, #tpu.memory_space<vmem>>, %arg3: memref<4x1x8xf32, #tpu.memory_space<vmem>>, %arg4: memref<4x8x9xf32, #tpu.memory_space<vmem>>, %arg5: memref<1x8x8xi8, #tpu.memory_space<vmem>>, %arg6: memref<8x32xf32, #tpu.memory_space<vmem>>, %arg7: memref<4x8x1xf32, #tpu.memory_space<vmem>>, %arg8: memref<4x8x9xf32, #tpu.memory_space<vmem>>) attributes {dimension_semantics = [#tpu.dimension_semantics<parallel>, #tpu.dimension_semantics<arbitrary>], iteration_bounds = array<i64: 1, 1>, scalar_prefetch = 0 : i64, scratch_operands = 2 : i64, tpu.core_type = #tpu.core_type<tc>, window_params = [{transform_indices = @transform_0, window_bounds = array<i64: 4, 8, 1>}, {transform_indices = @transform_1, window_bounds = array<i64: 4, 1, 8>}, {transform_indices = @transform_2, window_bounds = array<i64: 4, 8, 9>}, {transform_indices = @transform_3, window_bounds = array<i64: 1, 8, 8>}, {transform_indices = @transform_4, window_bounds = array<i64: 8, 32>}]} {
    %c0_i32 = arith.constant 0 : i32
    %0 = arith.cmpi eq, %arg1, %c0_i32 : i32
    %1 = arith.extui %0 : i1 to i32
    %c0_i32_0 = arith.constant 0 : i32
    %2 = arith.cmpi ne, %1, %c0_i32_0 : i32
    scf.if %2 {
      %cst_110 = arith.constant -1.000000e+30 : f32
      %166 = vector.broadcast %cst_110 : f32 to vector<4x8x1xf32>
      %c0_111 = arith.constant 0 : index
      %c0_112 = arith.constant 0 : index
      %c0_113 = arith.constant 0 : index
      %167 = vector.load %arg7[%c0_111, %c0_112, %c0_113] : memref<4x8x1xf32, #tpu.memory_space<vmem>>, vector<4x8x1xf32>
      tpu.vector_store %arg7[%c0_111, %c0_112, %c0_113], %166 {strides = array<i32>} : memref<4x8x1xf32, #tpu.memory_space<vmem>>, vector<4x8x1xf32>,
      %cst_114 = arith.constant 0.000000e+00 : f32
      %168 = vector.broadcast %cst_114 : f32 to vector<4x8x9xf32>
      %c0_115 = arith.constant 0 : index
      %c0_116 = arith.constant 0 : index
      %c0_117 = arith.constant 0 : index
      %169 = vector.load %arg8[%c0_115, %c0_116, %c0_117] : memref<4x8x9xf32, #tpu.memory_space<vmem>>, vector<4x8x9xf32>
      tpu.vector_store %arg8[%c0_115, %c0_116, %c0_117], %168 {strides = array<i32>} : memref<4x8x9xf32, #tpu.memory_space<vmem>>, vector<4x8x9xf32>,
    } else {
    }
    %c0 = arith.constant 0 : index
    %c0_1 = arith.constant 0 : index
    %c0_2 = arith.constant 0 : index
    %3 = vector.load %arg5[%c0, %c0_1, %c0_2] : memref<1x8x8xi8, #tpu.memory_space<vmem>>, vector<1x8x8xi8>
    %4 = vector.shape_cast %3 : vector<1x8x8xi8> to vector<8x8xi8>
    %5 = arith.sitofp %4 : vector<8x8xi8> to vector<8x8xf32>
    %c0_3 = arith.constant 0 : index
    %c0_4 = arith.constant 0 : index
    %c0_5 = arith.constant 0 : index
    %6 = vector.load %arg2[%c0_3, %c0_4, %c0_5] : memref<4x8x1xf32, #tpu.memory_space<vmem>>, vector<1x8x1xf32>
    %7 = vector.shape_cast %6 : vector<1x8x1xf32> to vector<8x1xf32>
    %c0_6 = arith.constant 0 : index
    %c0_7 = arith.constant 0 : index
    %c0_8 = arith.constant 0 : index
    %8 = vector.load %arg3[%c0_6, %c0_7, %c0_8] : memref<4x1x8xf32, #tpu.memory_space<vmem>>, vector<1x1x8xf32>
    %9 = vector.shape_cast %8 : vector<1x1x8xf32> to vector<1x8xf32>
    %10 = vector.broadcast %7 : vector<8x1xf32> to vector<8x8xf32>
    %11 = vector.broadcast %9 : vector<1x8xf32> to vector<8x8xf32>
    %12 = arith.addf %10, %11 : vector<8x8xf32>
    %cst = arith.constant 0.000000e+00 : f32
    %13 = vector.broadcast %cst : f32 to vector<8x8xf32>
    %14 = arith.cmpf oge, %12, %13 : vector<8x8xf32>
    %cst_9 = arith.constant 2.000000e-01 : f32
    %15 = vector.broadcast %cst_9 : f32 to vector<8x8xf32>
    %16 = arith.mulf %15, %12 : vector<8x8xf32>
    %17 = arith.select %14, %12, %16 : vector<8x8xi1>, vector<8x8xf32>
    %c0_10 = arith.constant 0 : index
    %c0_11 = arith.constant 0 : index
    %c0_12 = arith.constant 0 : index
    %18 = vector.load %arg7[%c0_10, %c0_11, %c0_12] : memref<4x8x1xf32, #tpu.memory_space<vmem>>, vector<1x8x1xf32>
    %19 = vector.shape_cast %18 : vector<1x8x1xf32> to vector<8x1xf32>
    %cst_13 = arith.constant dense<0xFF800000> : vector<8xf32>
    %20 = vector.multi_reduction <maximumf>, %17, %cst_13 [1] : vector<8x8xf32> to vector<8xf32>
    %21 = vector.shape_cast %20 : vector<8xf32> to vector<8x1xf32>
    %22 = arith.maximumf %19, %21 : vector<8x1xf32>
    %23 = arith.subf %19, %22 : vector<8x1xf32>
    %24 = math.exp %23 : vector<8x1xf32>
    %25 = vector.broadcast %22 : vector<8x1xf32> to vector<8x8xf32>
    %26 = arith.subf %17, %25 : vector<8x8xf32>
    %27 = math.exp %26 : vector<8x8xf32>
    %28 = arith.mulf %27, %5 : vector<8x8xf32>
    %c0_14 = arith.constant 0 : index
    %c0_15 = arith.constant 0 : index
    %c0_16 = arith.constant 0 : index
    %29 = vector.load %arg4[%c0_14, %c0_15, %c0_16] : memref<4x8x9xf32, #tpu.memory_space<vmem>>, vector<1x8x9xf32>
    %30 = vector.shape_cast %29 : vector<1x8x9xf32> to vector<8x9xf32>
    %cst_17 = arith.constant dense<0.000000e+00> : vector<8x9xf32>
    %31 = tpu.matmul %28, %30, %cst_17 {dimension_numbers = #tpu.dot_dimension_numbers<[1], [0], [0], [1], [0, 0, 1, 1], [], []>} : vector<8x8xf32>, vector<8x9xf32>, vector<8x9xf32> -> vector<8x9xf32>
    %c0_18 = arith.constant 0 : index
    %c0_19 = arith.constant 0 : index
    %c0_20 = arith.constant 0 : index
    %32 = vector.load %arg8[%c0_18, %c0_19, %c0_20] : memref<4x8x9xf32, #tpu.memory_space<vmem>>, vector<1x8x9xf32>
    %33 = vector.shape_cast %32 : vector<1x8x9xf32> to vector<8x9xf32>
    %34 = vector.broadcast %24 : vector<8x1xf32> to vector<8x9xf32>
    %35 = arith.mulf %34, %33 : vector<8x9xf32>
    %36 = arith.addf %35, %31 : vector<8x9xf32>
    %c0_21 = arith.constant 0 : index
    %c0_22 = arith.constant 0 : index
    %c0_23 = arith.constant 0 : index
    %37 = vector.load %arg8[%c0_21, %c0_22, %c0_23] : memref<4x8x9xf32, #tpu.memory_space<vmem>>, vector<1x8x9xf32>
    %38 = vector.shape_cast %37 : vector<1x8x9xf32> to vector<8x9xf32>
    %39 = vector.shape_cast %36 : vector<8x9xf32> to vector<1x8x9xf32>
    tpu.vector_store %arg8[%c0_21, %c0_22, %c0_23], %39 {strides = array<i32>} : memref<4x8x9xf32, #tpu.memory_space<vmem>>, vector<1x8x9xf32>,
    %c0_24 = arith.constant 0 : index
    %c0_25 = arith.constant 0 : index
    %c0_26 = arith.constant 0 : index
    %40 = vector.load %arg7[%c0_24, %c0_25, %c0_26] : memref<4x8x1xf32, #tpu.memory_space<vmem>>, vector<1x8x1xf32>
    %41 = vector.shape_cast %40 : vector<1x8x1xf32> to vector<8x1xf32>
    %42 = vector.shape_cast %22 : vector<8x1xf32> to vector<1x8x1xf32>
    tpu.vector_store %arg7[%c0_24, %c0_25, %c0_26], %42 {strides = array<i32>} : memref<4x8x1xf32, #tpu.memory_space<vmem>>, vector<1x8x1xf32>,
    %c0_27 = arith.constant 0 : index
    %c0_28 = arith.constant 0 : index
    %c0_29 = arith.constant 0 : index
    %43 = vector.load %arg5[%c0_27, %c0_28, %c0_29] : memref<1x8x8xi8, #tpu.memory_space<vmem>>, vector<1x8x8xi8>
    %44 = vector.shape_cast %43 : vector<1x8x8xi8> to vector<8x8xi8>
    %45 = arith.sitofp %44 : vector<8x8xi8> to vector<8x8xf32>
    %c1 = arith.constant 1 : index
    %c0_30 = arith.constant 0 : index
    %c0_31 = arith.constant 0 : index
    %46 = vector.load %arg2[%c1, %c0_30, %c0_31] : memref<4x8x1xf32, #tpu.memory_space<vmem>>, vector<1x8x1xf32>
    %47 = vector.shape_cast %46 : vector<1x8x1xf32> to vector<8x1xf32>
    %c1_32 = arith.constant 1 : index
    %c0_33 = arith.constant 0 : index
    %c0_34 = arith.constant 0 : index
    %48 = vector.load %arg3[%c1_32, %c0_33, %c0_34] : memref<4x1x8xf32, #tpu.memory_space<vmem>>, vector<1x1x8xf32>
    %49 = vector.shape_cast %48 : vector<1x1x8xf32> to vector<1x8xf32>
    %50 = vector.broadcast %47 : vector<8x1xf32> to vector<8x8xf32>
    %51 = vector.broadcast %49 : vector<1x8xf32> to vector<8x8xf32>
    %52 = arith.addf %50, %51 : vector<8x8xf32>
    %cst_35 = arith.constant 0.000000e+00 : f32
    %53 = vector.broadcast %cst_35 : f32 to vector<8x8xf32>
    %54 = arith.cmpf oge, %52, %53 : vector<8x8xf32>
    %cst_36 = arith.constant 2.000000e-01 : f32
    %55 = vector.broadcast %cst_36 : f32 to vector<8x8xf32>
    %56 = arith.mulf %55, %52 : vector<8x8xf32>
    %57 = arith.select %54, %52, %56 : vector<8x8xi1>, vector<8x8xf32>
    %c1_37 = arith.constant 1 : index
    %c0_38 = arith.constant 0 : index
    %c0_39 = arith.constant 0 : index
    %58 = vector.load %arg7[%c1_37, %c0_38, %c0_39] : memref<4x8x1xf32, #tpu.memory_space<vmem>>, vector<1x8x1xf32>
    %59 = vector.shape_cast %58 : vector<1x8x1xf32> to vector<8x1xf32>
    %cst_40 = arith.constant dense<0xFF800000> : vector<8xf32>
    %60 = vector.multi_reduction <maximumf>, %57, %cst_40 [1] : vector<8x8xf32> to vector<8xf32>
    %61 = vector.shape_cast %60 : vector<8xf32> to vector<8x1xf32>
    %62 = arith.maximumf %59, %61 : vector<8x1xf32>
    %63 = arith.subf %59, %62 : vector<8x1xf32>
    %64 = math.exp %63 : vector<8x1xf32>
    %65 = vector.broadcast %62 : vector<8x1xf32> to vector<8x8xf32>
    %66 = arith.subf %57, %65 : vector<8x8xf32>
    %67 = math.exp %66 : vector<8x8xf32>
    %68 = arith.mulf %67, %45 : vector<8x8xf32>
    %c1_41 = arith.constant 1 : index
    %c0_42 = arith.constant 0 : index
    %c0_43 = arith.constant 0 : index
    %69 = vector.load %arg4[%c1_41, %c0_42, %c0_43] : memref<4x8x9xf32, #tpu.memory_space<vmem>>, vector<1x8x9xf32>
    %70 = vector.shape_cast %69 : vector<1x8x9xf32> to vector<8x9xf32>
    %cst_44 = arith.constant dense<0.000000e+00> : vector<8x9xf32>
    %71 = tpu.matmul %68, %70, %cst_44 {dimension_numbers = #tpu.dot_dimension_numbers<[1], [0], [0], [1], [0, 0, 1, 1], [], []>} : vector<8x8xf32>, vector<8x9xf32>, vector<8x9xf32> -> vector<8x9xf32>
    %c1_45 = arith.constant 1 : index
    %c0_46 = arith.constant 0 : index
    %c0_47 = arith.constant 0 : index
    %72 = vector.load %arg8[%c1_45, %c0_46, %c0_47] : memref<4x8x9xf32, #tpu.memory_space<vmem>>, vector<1x8x9xf32>
    %73 = vector.shape_cast %72 : vector<1x8x9xf32> to vector<8x9xf32>
    %74 = vector.broadcast %64 : vector<8x1xf32> to vector<8x9xf32>
    %75 = arith.mulf %74, %73 : vector<8x9xf32>
    %76 = arith.addf %75, %71 : vector<8x9xf32>
    %c1_48 = arith.constant 1 : index
    %c0_49 = arith.constant 0 : index
    %c0_50 = arith.constant 0 : index
    %77 = vector.load %arg8[%c1_48, %c0_49, %c0_50] : memref<4x8x9xf32, #tpu.memory_space<vmem>>, vector<1x8x9xf32>
    %78 = vector.shape_cast %77 : vector<1x8x9xf32> to vector<8x9xf32>
    %79 = vector.shape_cast %76 : vector<8x9xf32> to vector<1x8x9xf32>
    tpu.vector_store %arg8[%c1_48, %c0_49, %c0_50], %79 {strides = array<i32>} : memref<4x8x9xf32, #tpu.memory_space<vmem>>, vector<1x8x9xf32>,
    %c1_51 = arith.constant 1 : index
    %c0_52 = arith.constant 0 : index
    %c0_53 = arith.constant 0 : index
    %80 = vector.load %arg7[%c1_51, %c0_52, %c0_53] : memref<4x8x1xf32, #tpu.memory_space<vmem>>, vector<1x8x1xf32>
    %81 = vector.shape_cast %80 : vector<1x8x1xf32> to vector<8x1xf32>
    %82 = vector.shape_cast %62 : vector<8x1xf32> to vector<1x8x1xf32>
    tpu.vector_store %arg7[%c1_51, %c0_52, %c0_53], %82 {strides = array<i32>} : memref<4x8x1xf32, #tpu.memory_space<vmem>>, vector<1x8x1xf32>,
    %c0_54 = arith.constant 0 : index
    %c0_55 = arith.constant 0 : index
    %c0_56 = arith.constant 0 : index
    %83 = vector.load %arg5[%c0_54, %c0_55, %c0_56] : memref<1x8x8xi8, #tpu.memory_space<vmem>>, vector<1x8x8xi8>
    %84 = vector.shape_cast %83 : vector<1x8x8xi8> to vector<8x8xi8>
    %85 = arith.sitofp %84 : vector<8x8xi8> to vector<8x8xf32>
    %c2 = arith.constant 2 : index
    %c0_57 = arith.constant 0 : index
    %c0_58 = arith.constant 0 : index
    %86 = vector.load %arg2[%c2, %c0_57, %c0_58] : memref<4x8x1xf32, #tpu.memory_space<vmem>>, vector<1x8x1xf32>
    %87 = vector.shape_cast %86 : vector<1x8x1xf32> to vector<8x1xf32>
    %c2_59 = arith.constant 2 : index
    %c0_60 = arith.constant 0 : index
    %c0_61 = arith.constant 0 : index
    %88 = vector.load %arg3[%c2_59, %c0_60, %c0_61] : memref<4x1x8xf32, #tpu.memory_space<vmem>>, vector<1x1x8xf32>
    %89 = vector.shape_cast %88 : vector<1x1x8xf32> to vector<1x8xf32>
    %90 = vector.broadcast %87 : vector<8x1xf32> to vector<8x8xf32>
    %91 = vector.broadcast %89 : vector<1x8xf32> to vector<8x8xf32>
    %92 = arith.addf %90, %91 : vector<8x8xf32>
    %cst_62 = arith.constant 0.000000e+00 : f32
    %93 = vector.broadcast %cst_62 : f32 to vector<8x8xf32>
    %94 = arith.cmpf oge, %92, %93 : vector<8x8xf32>
    %cst_63 = arith.constant 2.000000e-01 : f32
    %95 = vector.broadcast %cst_63 : f32 to vector<8x8xf32>
    %96 = arith.mulf %95, %92 : vector<8x8xf32>
    %97 = arith.select %94, %92, %96 : vector<8x8xi1>, vector<8x8xf32>
    %c2_64 = arith.constant 2 : index
    %c0_65 = arith.constant 0 : index
    %c0_66 = arith.constant 0 : index
    %98 = vector.load %arg7[%c2_64, %c0_65, %c0_66] : memref<4x8x1xf32, #tpu.memory_space<vmem>>, vector<1x8x1xf32>
    %99 = vector.shape_cast %98 : vector<1x8x1xf32> to vector<8x1xf32>
    %cst_67 = arith.constant dense<0xFF800000> : vector<8xf32>
    %100 = vector.multi_reduction <maximumf>, %97, %cst_67 [1] : vector<8x8xf32> to vector<8xf32>
    %101 = vector.shape_cast %100 : vector<8xf32> to vector<8x1xf32>
    %102 = arith.maximumf %99, %101 : vector<8x1xf32>
    %103 = arith.subf %99, %102 : vector<8x1xf32>
    %104 = math.exp %103 : vector<8x1xf32>
    %105 = vector.broadcast %102 : vector<8x1xf32> to vector<8x8xf32>
    %106 = arith.subf %97, %105 : vector<8x8xf32>
    %107 = math.exp %106 : vector<8x8xf32>
    %108 = arith.mulf %107, %85 : vector<8x8xf32>
    %c2_68 = arith.constant 2 : index
    %c0_69 = arith.constant 0 : index
    %c0_70 = arith.constant 0 : index
    %109 = vector.load %arg4[%c2_68, %c0_69, %c0_70] : memref<4x8x9xf32, #tpu.memory_space<vmem>>, vector<1x8x9xf32>
    %110 = vector.shape_cast %109 : vector<1x8x9xf32> to vector<8x9xf32>
    %cst_71 = arith.constant dense<0.000000e+00> : vector<8x9xf32>
    %111 = tpu.matmul %108, %110, %cst_71 {dimension_numbers = #tpu.dot_dimension_numbers<[1], [0], [0], [1], [0, 0, 1, 1], [], []>} : vector<8x8xf32>, vector<8x9xf32>, vector<8x9xf32> -> vector<8x9xf32>
    %c2_72 = arith.constant 2 : index
    %c0_73 = arith.constant 0 : index
    %c0_74 = arith.constant 0 : index
    %112 = vector.load %arg8[%c2_72, %c0_73, %c0_74] : memref<4x8x9xf32, #tpu.memory_space<vmem>>, vector<1x8x9xf32>
    %113 = vector.shape_cast %112 : vector<1x8x9xf32> to vector<8x9xf32>
    %114 = vector.broadcast %104 : vector<8x1xf32> to vector<8x9xf32>
    %115 = arith.mulf %114, %113 : vector<8x9xf32>
    %116 = arith.addf %115, %111 : vector<8x9xf32>
    %c2_75 = arith.constant 2 : index
    %c0_76 = arith.constant 0 : index
    %c0_77 = arith.constant 0 : index
    %117 = vector.load %arg8[%c2_75, %c0_76, %c0_77] : memref<4x8x9xf32, #tpu.memory_space<vmem>>, vector<1x8x9xf32>
    %118 = vector.shape_cast %117 : vector<1x8x9xf32> to vector<8x9xf32>
    %119 = vector.shape_cast %116 : vector<8x9xf32> to vector<1x8x9xf32>
    tpu.vector_store %arg8[%c2_75, %c0_76, %c0_77], %119 {strides = array<i32>} : memref<4x8x9xf32, #tpu.memory_space<vmem>>, vector<1x8x9xf32>,
    %c2_78 = arith.constant 2 : index
    %c0_79 = arith.constant 0 : index
    %c0_80 = arith.constant 0 : index
    %120 = vector.load %arg7[%c2_78, %c0_79, %c0_80] : memref<4x8x1xf32, #tpu.memory_space<vmem>>, vector<1x8x1xf32>
    %121 = vector.shape_cast %120 : vector<1x8x1xf32> to vector<8x1xf32>
    %122 = vector.shape_cast %102 : vector<8x1xf32> to vector<1x8x1xf32>
    tpu.vector_store %arg7[%c2_78, %c0_79, %c0_80], %122 {strides = array<i32>} : memref<4x8x1xf32, #tpu.memory_space<vmem>>, vector<1x8x1xf32>,
    %c0_81 = arith.constant 0 : index
    %c0_82 = arith.constant 0 : index
    %c0_83 = arith.constant 0 : index
    %123 = vector.load %arg5[%c0_81, %c0_82, %c0_83] : memref<1x8x8xi8, #tpu.memory_space<vmem>>, vector<1x8x8xi8>
    %124 = vector.shape_cast %123 : vector<1x8x8xi8> to vector<8x8xi8>
    %125 = arith.sitofp %124 : vector<8x8xi8> to vector<8x8xf32>
    %c3 = arith.constant 3 : index
    %c0_84 = arith.constant 0 : index
    %c0_85 = arith.constant 0 : index
    %126 = vector.load %arg2[%c3, %c0_84, %c0_85] : memref<4x8x1xf32, #tpu.memory_space<vmem>>, vector<1x8x1xf32>
    %127 = vector.shape_cast %126 : vector<1x8x1xf32> to vector<8x1xf32>
    %c3_86 = arith.constant 3 : index
    %c0_87 = arith.constant 0 : index
    %c0_88 = arith.constant 0 : index
    %128 = vector.load %arg3[%c3_86, %c0_87, %c0_88] : memref<4x1x8xf32, #tpu.memory_space<vmem>>, vector<1x1x8xf32>
    %129 = vector.shape_cast %128 : vector<1x1x8xf32> to vector<1x8xf32>
    %130 = vector.broadcast %127 : vector<8x1xf32> to vector<8x8xf32>
    %131 = vector.broadcast %129 : vector<1x8xf32> to vector<8x8xf32>
    %132 = arith.addf %130, %131 : vector<8x8xf32>
    %cst_89 = arith.constant 0.000000e+00 : f32
    %133 = vector.broadcast %cst_89 : f32 to vector<8x8xf32>
    %134 = arith.cmpf oge, %132, %133 : vector<8x8xf32>
    %cst_90 = arith.constant 2.000000e-01 : f32
    %135 = vector.broadcast %cst_90 : f32 to vector<8x8xf32>
    %136 = arith.mulf %135, %132 : vector<8x8xf32>
    %137 = arith.select %134, %132, %136 : vector<8x8xi1>, vector<8x8xf32>
    %c3_91 = arith.constant 3 : index
    %c0_92 = arith.constant 0 : index
    %c0_93 = arith.constant 0 : index
    %138 = vector.load %arg7[%c3_91, %c0_92, %c0_93] : memref<4x8x1xf32, #tpu.memory_space<vmem>>, vector<1x8x1xf32>
    %139 = vector.shape_cast %138 : vector<1x8x1xf32> to vector<8x1xf32>
    %cst_94 = arith.constant dense<0xFF800000> : vector<8xf32>
    %140 = vector.multi_reduction <maximumf>, %137, %cst_94 [1] : vector<8x8xf32> to vector<8xf32>
    %141 = vector.shape_cast %140 : vector<8xf32> to vector<8x1xf32>
    %142 = arith.maximumf %139, %141 : vector<8x1xf32>
    %143 = arith.subf %139, %142 : vector<8x1xf32>
    %144 = math.exp %143 : vector<8x1xf32>
    %145 = vector.broadcast %142 : vector<8x1xf32> to vector<8x8xf32>
    %146 = arith.subf %137, %145 : vector<8x8xf32>
    %147 = math.exp %146 : vector<8x8xf32>
    %148 = arith.mulf %147, %125 : vector<8x8xf32>
    %c3_95 = arith.constant 3 : index
    %c0_96 = arith.constant 0 : index
    %c0_97 = arith.constant 0 : index
    %149 = vector.load %arg4[%c3_95, %c0_96, %c0_97] : memref<4x8x9xf32, #tpu.memory_space<vmem>>, vector<1x8x9xf32>
    %150 = vector.shape_cast %149 : vector<1x8x9xf32> to vector<8x9xf32>
    %cst_98 = arith.constant dense<0.000000e+00> : vector<8x9xf32>
    %151 = tpu.matmul %148, %150, %cst_98 {dimension_numbers = #tpu.dot_dimension_numbers<[1], [0], [0], [1], [0, 0, 1, 1], [], []>} : vector<8x8xf32>, vector<8x9xf32>, vector<8x9xf32> -> vector<8x9xf32>
    %c3_99 = arith.constant 3 : index
    %c0_100 = arith.constant 0 : index
    %c0_101 = arith.constant 0 : index
    %152 = vector.load %arg8[%c3_99, %c0_100, %c0_101] : memref<4x8x9xf32, #tpu.memory_space<vmem>>, vector<1x8x9xf32>
    %153 = vector.shape_cast %152 : vector<1x8x9xf32> to vector<8x9xf32>
    %154 = vector.broadcast %144 : vector<8x1xf32> to vector<8x9xf32>
    %155 = arith.mulf %154, %153 : vector<8x9xf32>
    %156 = arith.addf %155, %151 : vector<8x9xf32>
    %c3_102 = arith.constant 3 : index
    %c0_103 = arith.constant 0 : index
    %c0_104 = arith.constant 0 : index
    %157 = vector.load %arg8[%c3_102, %c0_103, %c0_104] : memref<4x8x9xf32, #tpu.memory_space<vmem>>, vector<1x8x9xf32>
    %158 = vector.shape_cast %157 : vector<1x8x9xf32> to vector<8x9xf32>
    %159 = vector.shape_cast %156 : vector<8x9xf32> to vector<1x8x9xf32>
    tpu.vector_store %arg8[%c3_102, %c0_103, %c0_104], %159 {strides = array<i32>} : memref<4x8x9xf32, #tpu.memory_space<vmem>>, vector<1x8x9xf32>,
    %c3_105 = arith.constant 3 : index
    %c0_106 = arith.constant 0 : index
    %c0_107 = arith.constant 0 : index
    %160 = vector.load %arg7[%c3_105, %c0_106, %c0_107] : memref<4x8x1xf32, #tpu.memory_space<vmem>>, vector<1x8x1xf32>
    %161 = vector.shape_cast %160 : vector<1x8x1xf32> to vector<8x1xf32>
    %162 = vector.shape_cast %142 : vector<8x1xf32> to vector<1x8x1xf32>
    tpu.vector_store %arg7[%c3_105, %c0_106, %c0_107], %162 {strides = array<i32>} : memref<4x8x1xf32, #tpu.memory_space<vmem>>, vector<1x8x1xf32>,
    %c0_i32_108 = arith.constant 0 : i32
    %163 = arith.cmpi eq, %arg1, %c0_i32_108 : i32
    %164 = arith.extui %163 : i1 to i32
    %c0_i32_109 = arith.constant 0 : i32
    %165 = arith.cmpi ne, %164, %c0_i32_109 : i32
    scf.if %165 {
      %c0_110 = arith.constant 0 : index
      %c0_111 = arith.constant 0 : index
      %c0_112 = arith.constant 0 : index
      %166 = vector.load %arg8[%c0_110, %c0_111, %c0_112] : memref<4x8x9xf32, #tpu.memory_space<vmem>>, vector<1x8x9xf32>
      %167 = vector.shape_cast %166 : vector<1x8x9xf32> to vector<8x9xf32>
      %168 = vector.extract_strided_slice %167 {offsets = [0, 8], sizes = [8, 1], strides = [1, 1]} : vector<8x9xf32> to vector<8x1xf32>
      %cst_113 = arith.constant 9.99999968E-21 : f32
      %169 = vector.broadcast %cst_113 : f32 to vector<8x1xf32>
      %170 = arith.maximumf %168, %169 : vector<8x1xf32>
      %171 = tpu.reciprocal %170 {approx = true} : vector<8x1xf32> -> vector<8x1xf32>
      %172 = arith.mulf %170, %171 : vector<8x1xf32>
      %cst_114 = arith.constant 2.000000e+00 : f32
      %173 = vector.broadcast %cst_114 : f32 to vector<8x1xf32>
      %174 = arith.subf %173, %172 : vector<8x1xf32>
      %175 = arith.mulf %171, %174 : vector<8x1xf32>
      %176 = vector.extract_strided_slice %167 {offsets = [0, 0], sizes = [8, 8], strides = [1, 1]} : vector<8x9xf32> to vector<8x8xf32>
      %177 = vector.broadcast %175 : vector<8x1xf32> to vector<8x8xf32>
      %178 = arith.mulf %176, %177 : vector<8x8xf32>
      %c1_115 = arith.constant 1 : index
      %c0_116 = arith.constant 0 : index
      %c0_117 = arith.constant 0 : index
      %179 = vector.load %arg8[%c1_115, %c0_116, %c0_117] : memref<4x8x9xf32, #tpu.memory_space<vmem>>, vector<1x8x9xf32>
      %180 = vector.shape_cast %179 : vector<1x8x9xf32> to vector<8x9xf32>
      %181 = vector.extract_strided_slice %180 {offsets = [0, 8], sizes = [8, 1], strides = [1, 1]} : vector<8x9xf32> to vector<8x1xf32>
      %cst_118 = arith.constant 9.99999968E-21 : f32
      %182 = vector.broadcast %cst_118 : f32 to vector<8x1xf32>
      %183 = arith.maximumf %181, %182 : vector<8x1xf32>
      %184 = tpu.reciprocal %183 {approx = true} : vector<8x1xf32> -> vector<8x1xf32>
      %185 = arith.mulf %183, %184 : vector<8x1xf32>
      %cst_119 = arith.constant 2.000000e+00 : f32
      %186 = vector.broadcast %cst_119 : f32 to vector<8x1xf32>
      %187 = arith.subf %186, %185 : vector<8x1xf32>
      %188 = arith.mulf %184, %187 : vector<8x1xf32>
      %189 = vector.extract_strided_slice %180 {offsets = [0, 0], sizes = [8, 8], strides = [1, 1]} : vector<8x9xf32> to vector<8x8xf32>
      %190 = vector.broadcast %188 : vector<8x1xf32> to vector<8x8xf32>
      %191 = arith.mulf %189, %190 : vector<8x8xf32>
      %c2_120 = arith.constant 2 : index
      %c0_121 = arith.constant 0 : index
      %c0_122 = arith.constant 0 : index
      %192 = vector.load %arg8[%c2_120, %c0_121, %c0_122] : memref<4x8x9xf32, #tpu.memory_space<vmem>>, vector<1x8x9xf32>
      %193 = vector.shape_cast %192 : vector<1x8x9xf32> to vector<8x9xf32>
      %194 = vector.extract_strided_slice %193 {offsets = [0, 8], sizes = [8, 1], strides = [1, 1]} : vector<8x9xf32> to vector<8x1xf32>
      %cst_123 = arith.constant 9.99999968E-21 : f32
      %195 = vector.broadcast %cst_123 : f32 to vector<8x1xf32>
      %196 = arith.maximumf %194, %195 : vector<8x1xf32>
      %197 = tpu.reciprocal %196 {approx = true} : vector<8x1xf32> -> vector<8x1xf32>
      %198 = arith.mulf %196, %197 : vector<8x1xf32>
      %cst_124 = arith.constant 2.000000e+00 : f32
      %199 = vector.broadcast %cst_124 : f32 to vector<8x1xf32>
      %200 = arith.subf %199, %198 : vector<8x1xf32>
      %201 = arith.mulf %197, %200 : vector<8x1xf32>
      %202 = vector.extract_strided_slice %193 {offsets = [0, 0], sizes = [8, 8], strides = [1, 1]} : vector<8x9xf32> to vector<8x8xf32>
      %203 = vector.broadcast %201 : vector<8x1xf32> to vector<8x8xf32>
      %204 = arith.mulf %202, %203 : vector<8x8xf32>
      %c3_125 = arith.constant 3 : index
      %c0_126 = arith.constant 0 : index
      %c0_127 = arith.constant 0 : index
      %205 = vector.load %arg8[%c3_125, %c0_126, %c0_127] : memref<4x8x9xf32, #tpu.memory_space<vmem>>, vector<1x8x9xf32>
      %206 = vector.shape_cast %205 : vector<1x8x9xf32> to vector<8x9xf32>
      %207 = vector.extract_strided_slice %206 {offsets = [0, 8], sizes = [8, 1], strides = [1, 1]} : vector<8x9xf32> to vector<8x1xf32>
      %cst_128 = arith.constant 9.99999968E-21 : f32
      %208 = vector.broadcast %cst_128 : f32 to vector<8x1xf32>
      %209 = arith.maximumf %207, %208 : vector<8x1xf32>
      %210 = tpu.reciprocal %209 {approx = true} : vector<8x1xf32> -> vector<8x1xf32>
      %211 = arith.mulf %209, %210 : vector<8x1xf32>
      %cst_129 = arith.constant 2.000000e+00 : f32
      %212 = vector.broadcast %cst_129 : f32 to vector<8x1xf32>
      %213 = arith.subf %212, %211 : vector<8x1xf32>
      %214 = arith.mulf %210, %213 : vector<8x1xf32>
      %215 = vector.extract_strided_slice %206 {offsets = [0, 0], sizes = [8, 8], strides = [1, 1]} : vector<8x9xf32> to vector<8x8xf32>
      %216 = vector.broadcast %214 : vector<8x1xf32> to vector<8x8xf32>
      %217 = arith.mulf %215, %216 : vector<8x8xf32>
      %218 = tpu.concatenate %178, %191, %204, %217 in 1 : vector<8x8xf32>, vector<8x8xf32>, vector<8x8xf32>, vector<8x8xf32> -> vector<8x32xf32>
      %c0_130 = arith.constant 0 : index
      %c0_131 = arith.constant 0 : index
      %219 = vector.load %arg6[%c0_130, %c0_131] : memref<8x32xf32, #tpu.memory_space<vmem>>, vector<8x32xf32>
      tpu.vector_store %arg6[%c0_130, %c0_131], %218 {strides = array<i32>} : memref<8x32xf32, #tpu.memory_space<vmem>>, vector<8x32xf32>,
    } else {
    }
    return
  }
  func.func @transform_0(%arg0: i32, %arg1: i32) -> (i32, i32, i32) {
    %c0_i32 = arith.constant 0 : i32
    %c0_i32_0 = arith.constant 0 : i32
    %c0_i32_1 = arith.constant 0 : i32
    return %c0_i32, %arg0, %c0_i32_0 : i32, i32, i32
  }
  func.func @transform_1(%arg0: i32, %arg1: i32) -> (i32, i32, i32) {
    %c0_i32 = arith.constant 0 : i32
    %c0_i32_0 = arith.constant 0 : i32
    %c0_i32_1 = arith.constant 0 : i32
    return %c0_i32, %c0_i32_0, %arg1 : i32, i32, i32
  }
  func.func @transform_2(%arg0: i32, %arg1: i32) -> (i32, i32, i32) {
    %c0_i32 = arith.constant 0 : i32
    %c0_i32_0 = arith.constant 0 : i32
    %c0_i32_1 = arith.constant 0 : i32
    return %c0_i32, %arg1, %c0_i32_0 : i32, i32, i32
  }
  func.func @transform_3(%arg0: i32, %arg1: i32) -> (i32, i32, i32) {
    %c0_i32 = arith.constant 0 : i32
    %c0_i32_0 = arith.constant 0 : i32
    return %c0_i32, %arg0, %arg1 : i32, i32, i32
  }
  func.func @transform_4(%arg0: i32, %arg1: i32) -> (i32, i32) {
    %c0_i32 = arith.constant 0 : i32
    %c0_i32_0 = arith.constant 0 : i32
    return %arg0, %c0_i32 : i32, i32
  }
}

</mosaic_0001>

<llo_original>
// kernel: tpu_custom_call.1
$region0: #{tpu_custom_call.1}
  #allocation0 [shape = 'u32[]', space=smem, size = 0x4, offset = 0x4, fixed_abs, tag = 'smem constant byte address 0x4 - core index']
  #allocation1 [shape = 'u32[144,128]{1,0:T(1,128)}', space=vmem, size = 0x12000, scoped, tag = 'internal scratch']
  #allocation2 [shape = 'f32[4,8,1]{2,1,0:T(8,128)}', space=vmem, size = 0x4000, scoped, tag = 'scratch operand']
  #allocation3 [shape = 'f32[4,8,9]{2,1,0:T(8,128)}', space=vmem, size = 0x4000, scoped, tag = 'scratch operand']
  %s0 = inlined_call_operand.vmem [shape: f32[4,8,1], index: 0, kind: input, shape index: {}]
  %s1 = inlined_call_operand.vmem [shape: f32[4,1,8], index: 1, kind: input, shape index: {}]
  %s2 = inlined_call_operand.vmem [shape: f32[4,8,9], index: 2, kind: input, shape index: {}]
  %s3 = inlined_call_operand.vmem [shape: s8[1,8,8], index: 3, kind: input, shape index: {}]
  %s4 = inlined_call_operand.hbm [shape: f32[8,32], index: 4, kind: output, shape index: {}]
  %s5 = sld [smem:[#allocation0]]
  $region34: #{tpu_custom_call.1} parent=0
    _
  %s7 = ssub.s32 1, %s5
  %s8 = scalar_select 0, %s7, %s5
  $region1: #{tpu_custom_call.1} parent=0
    #allocation4 [shape = 'u8[4096]{0}', space=vmem, size = 0x1000, scoped, tag = 'output window, operand 0, single buffered']
    #allocation5 [shape = 's32[1]{0}', space=sflag, size = 0x4, scoped, tag = 'scoped memory for tpu_custom_call.1']
    %9 = vsyncpa [#allocation5], 0
    // Predicated region
    $region2: #{tpu_custom_call.1} parent=1 // pred_check
      _
    $region3: #{tpu_custom_call.1} parent=1 // pred_check_branch
      %11 = sbr.rel (0) target = $region5
    $region4: #{tpu_custom_call.1} parent=1 // pred_region
      _
    $region5: #{tpu_custom_call.1} parent=1 // pred_fallthru
      _
    // Predicated region
    $region6: #{tpu_custom_call.1} parent=1 // pred_check
      _
    $region7: #{tpu_custom_call.1} parent=1 // pred_check_branch
      %13 = sbr.rel (0) target = $region9
    $region8: #{tpu_custom_call.1} parent=1 // pred_region
      _
    $region9: #{tpu_custom_call.1} parent=1 // pred_fallthru
      _
    // Predicated region
    $region10: #{tpu_custom_call.1} parent=1 // pred_check
      _
    $region11: #{tpu_custom_call.1} parent=1 // pred_check_branch
      %15 = sbr.rel (0) target = $region13
    $region12: #{tpu_custom_call.1} parent=1 // pred_region
      _
    $region13: #{tpu_custom_call.1} parent=1 // pred_fallthru
      _
    // Predicated region
    $region14: #{tpu_custom_call.1} parent=1 // pred_check
      _
    $region15: #{tpu_custom_call.1} parent=1 // pred_check_branch
      %17 = sbr.rel (0) target = $region17
    $region16: #{tpu_custom_call.1} parent=1 // pred_region
      _
    $region17: #{tpu_custom_call.1} parent=1 // pred_fallthru
      _
    %p18 = scmp.eq.s32.totalorder 0, 0
    // Predicated region
    $region18: #{tpu_custom_call.1} parent=1 // pred_check
      %p19 = pneg %p18
    $region19: #{tpu_custom_call.1} parent=1 // pred_check_branch
      %21 = sbr.rel (%p19) target = $region21
    $region20: #{tpu_custom_call.1} parent=1 // pred_region
      %vm22 = vcmask 7168
      %23 = vst.msk [vmem:[#allocation2] sm:$0xff] %vm22, -1e+30
      %24 = vst.msk [vmem:[#allocation2 + $0x8] sm:$0xff] %vm22, -1e+30
      %25 = vst.msk [vmem:[#allocation2 + $0x10] sm:$0xff] %vm22, -1e+30
      %26 = vst.msk [vmem:[#allocation2 + $0x18] sm:$0xff] %vm22, -1e+30
      %vm27 = vcmask 72704
      %28 = vst.msk [vmem:[#allocation3] sm:$0xff] %vm27, 0.0
      %29 = vst.msk [vmem:[#allocation3 + $0x8] sm:$0xff] %vm27, 0.0
      %30 = vst.msk [vmem:[#allocation3 + $0x10] sm:$0xff] %vm27, 0.0
      %31 = vst.msk [vmem:[#allocation3 + $0x18] sm:$0xff] %vm27, 0.0
    $region21: #{tpu_custom_call.1} parent=1 // pred_fallthru
      _
    %v32 = vld [vmem:[%s3] sm:$0x3]
    %v33 = vunpack.c.0.s8 %v32
    %v34 = vcvt.s32.f32 %v33
    %v35 = vld [vmem:[%s0] sm:$0xff]
    %v36 = vld [vmem:[%s1] sm:$0x1]
    %38 = vset.pattern.permute.xlu0 0
    %39 = vperm.xlu0 %38, %v35
    %v40 = vpop.permute.xlu0 %39
    %v43 = vlaneseq
    %v44 = vshrl.u32 %v43, 7
    %v45 = vsub.s32 0, %v44
    %v46 = vrot.slane %v36, %v45
    %v48 = vadd.f32 %v40, %v46
    %vm49 = vcmp.ge.f32.partialorder %v48, 0.0
    %v50 = vmul.f32 %v48, 0.2
    %v51 = vsel %vm49, %v48, %v50
    %v52 = vld [vmem:[#allocation2] sm:$0xff]
    %vm53 = vcmask 64512
    %v54 = vsel %vm53, %v51, -inf
    %55 = vmax.xlane.f32.xlu0 %v54
    %v56 = vpop.xlane.xlu0 %55
    %v57 = vmax.f32 %v52, %v56
    %v58 = vsub.f32 %v52, %v57
    %v59 = vmul.f32 %v58, 1.442695
    %v60 = vpow.pop %v59
    %62 = vset.pattern.permute.xlu0 0
    %63 = vperm.xlu0 %62, %v57
    %v64 = vpop.permute.xlu0 %63
    %v66 = vsub.f32 %v51, %v64
    %v67 = vmul.f32 %v66, 1.442695
    %v68 = vpow.pop %v67
    %v69 = vmul.f32 %v68, %v34
    %v70 = vld [vmem:[%s2] sm:$0xff]
    %v72 = vsel %vm53, %v69, 0
    %74 = vmatprep.subr.mxu0 0.0
    %75 = vmatpush1.msra.mxu0 0.0
    %76 = vmatprep.subr.mxu0 0.0
    %77 = vmatpush1.msra.mxu0 0.0
    %78 = vmatprep.subr.mxu0 0.0
    %79 = vmatpush1.msra.mxu0 0.0
    %80 = vmatprep.subr.mxu0 0.0
    %81 = vmatpush1.msra.mxu0 0.0
    %82 = vmatprep.subr.mxu0 0.0
    %83 = vmatpush1.msra.mxu0 0.0
    %84 = vmatprep.subr.mxu0 0.0
    %85 = vmatpush1.msra.mxu0 0.0
    %86 = vmatprep.subr.mxu0 0.0
    %87 = vmatpush1.msra.mxu0 0.0
    %88 = vmatprep.subr.mxu0 0.0
    %89 = vmatpush1.msra.mxu0 0.0
    %90 = vmatprep.subr.mxu0 0.0
    %91 = vmatpush1.msra.mxu0 0.0
    %92 = vmatprep.subr.mxu0 0.0
    %93 = vmatpush1.msra.mxu0 0.0
    %94 = vmatprep.subr.mxu0 0.0
    %95 = vmatpush1.msra.mxu0 0.0
    %96 = vmatprep.subr.mxu0 0.0
    %97 = vmatpush1.msra.mxu0 0.0
    %98 = vmatprep.subr.mxu0 0.0
    %99 = vmatpush1.msra.mxu0 0.0
    %100 = vmatprep.subr.mxu0 0.0
    %101 = vmatpush1.msra.mxu0 0.0
    %102 = vmatprep.subr.mxu0 0.0
    %103 = vmatpush1.msra.mxu0 0.0
    %104 = vmatprep.subr.mxu0 0.0
    %105 = vmatpush1.msra.mxu0 %v70
    %106 = vmatprep.subr.mxu0 0.0
    %107 = vmatpush2.msra.mxu0 0.0
    %108 = vmatprep.subr.mxu0 0.0
    %109 = vmatpush2.msra.mxu0 0.0
    %110 = vmatprep.subr.mxu0 0.0
    %111 = vmatpush2.msra.mxu0 0.0
    %112 = vmatprep.subr.mxu0 0.0
    %113 = vmatpush2.msra.mxu0 0.0
    %114 = vmatprep.subr.mxu0 0.0
    %115 = vmatpush2.msra.mxu0 0.0
    %116 = vmatprep.subr.mxu0 0.0
    %117 = vmatpush2.msra.mxu0 0.0
    %118 = vmatprep.subr.mxu0 0.0
    %119 = vmatpush2.msra.mxu0 0.0
    %120 = vmatprep.subr.mxu0 0.0
    %121 = vmatpush2.msra.mxu0 0.0
    %122 = vmatprep.subr.mxu0 0.0
    %123 = vmatpush2.msra.mxu0 0.0
    %124 = vmatprep.subr.mxu0 0.0
    %125 = vmatpush2.msra.mxu0 0.0
    %126 = vmatprep.subr.mxu0 0.0
    %127 = vmatpush2.msra.mxu0 0.0
    %128 = vmatprep.subr.mxu0 0.0
    %129 = vmatpush2.msra.mxu0 0.0
    %130 = vmatprep.subr.mxu0 0.0
    %131 = vmatpush2.msra.mxu0 0.0
    %132 = vmatprep.subr.mxu0 0.0
    %133 = vmatpush2.msra.mxu0 0.0
    %134 = vmatprep.subr.mxu0 0.0
    %135 = vmatpush2.msra.mxu0 0.0
    %136 = vmatprep.subr.mxu0 0.0
    %137 = vmatpush2.msra.mxu0 0.0
    %138 = vmatprep.mubr.f32.mxu0 0.0
    %139 = vmatmul.mubr.f32.gmra.mxu0 %v72
    %v140 = vpop.f32.mrf.mxu0
    %v141 = vadd.f32 0.0, %v140
    %v142 = vpop.f32.mrf.mxu0
    %143 = vdwg.mxu0
    %v144 = vld [vmem:[#allocation3] sm:$0xff]
    %146 = vset.pattern.permute.xlu0 0
    %147 = vperm.xlu0 %146, %v60
    %v148 = vpop.permute.xlu0 %147
    %v150 = vmul.f32 %v148, %v144
    %v151 = vadd.f32 %v150, %v141
    %vm152 = vcmask 72704
    %153 = vst.msk [vmem:[#allocation3] sm:$0xff] %vm152, %v151
    %vm154 = vcmask 7168
    %155 = vst.msk [vmem:[#allocation2] sm:$0xff] %vm154, %v57
    %v156 = vld [vmem:[%s3] sm:$0x3]
    %v157 = vunpack.c.0.s8 %v156
    %v158 = vcvt.s32.f32 %v157
    %s159 = scalar_lea.vmem %s0, 8
    %v160 = vld [vmem:[%s159] sm:$0xff]
    %s161 = scalar_lea.vmem %s1, 1
    %v162 = vld [vmem:[%s161] sm:$0x1]
    %164 = vset.pattern.permute.xlu0 0
    %165 = vperm.xlu0 %164, %v160
    %v166 = vpop.permute.xlu0 %165
    %v169 = vlaneseq
    %v170 = vshrl.u32 %v169, 7
    %v171 = vsub.s32 0, %v170
    %v172 = vrot.slane %v162, %v171
    %v174 = vadd.f32 %v166, %v172
    %vm175 = vcmp.ge.f32.partialorder %v174, 0.0
    %v176 = vmul.f32 %v174, 0.2
    %v177 = vsel %vm175, %v174, %v176
    %s178 = scalar_lea.vmem [#allocation2], 8
    %v179 = vld [vmem:[%s178] sm:$0xff]
    %v180 = vsel %vm53, %v177, -inf
    %181 = vmax.xlane.f32.xlu0 %v180
    %v182 = vpop.xlane.xlu0 %181
    %v183 = vmax.f32 %v179, %v182
    %v184 = vsub.f32 %v179, %v183
    %v185 = vmul.f32 %v184, 1.442695
    %v186 = vpow.pop %v185
    %188 = vset.pattern.permute.xlu0 0
    %189 = vperm.xlu0 %188, %v183
    %v190 = vpop.permute.xlu0 %189
    %v192 = vsub.f32 %v177, %v190
    %v193 = vmul.f32 %v192, 1.442695
    %v194 = vpow.pop %v193
    %v195 = vmul.f32 %v194, %v158
    %s196 = scalar_lea.vmem %s2, 8
    %v197 = vld [vmem:[%s196] sm:$0xff]
    %v199 = vsel %vm53, %v195, 0
    %201 = vmatprep.subr.mxu0 0.0
    %202 = vmatpush1.msra.mxu0 0.0
    %203 = vmatprep.subr.mxu0 0.0
    %204 = vmatpush1.msra.mxu0 0.0
    %205 = vmatprep.subr.mxu0 0.0
    %206 = vmatpush1.msra.mxu0 0.0
    %207 = vmatprep.subr.mxu0 0.0
    %208 = vmatpush1.msra.mxu0 0.0
    %209 = vmatprep.subr.mxu0 0.0
    %210 = vmatpush1.msra.mxu0 0.0
    %211 = vmatprep.subr.mxu0 0.0
    %212 = vmatpush1.msra.mxu0 0.0
    %213 = vmatprep.subr.mxu0 0.0
    %214 = vmatpush1.msra.mxu0 0.0
    %215 = vmatprep.subr.mxu0 0.0
    %216 = vmatpush1.msra.mxu0 0.0
    %217 = vmatprep.subr.mxu0 0.0
    %218 = vmatpush1.msra.mxu0 0.0
    %219 = vmatprep.subr.mxu0 0.0
    %220 = vmatpush1.msra.mxu0 0.0
    %221 = vmatprep.subr.mxu0 0.0
    %222 = vmatpush1.msra.mxu0 0.0
    %223 = vmatprep.subr.mxu0 0.0
    %224 = vmatpush1.msra.mxu0 0.0
    %225 = vmatprep.subr.mxu0 0.0
    %226 = vmatpush1.msra.mxu0 0.0
    %227 = vmatprep.subr.mxu0 0.0
    %228 = vmatpush1.msra.mxu0 0.0
    %229 = vmatprep.subr.mxu0 0.0
    %230 = vmatpush1.msra.mxu0 0.0
    %231 = vmatprep.subr.mxu0 0.0
    %232 = vmatpush1.msra.mxu0 %v197
    %233 = vmatprep.subr.mxu0 0.0
    %234 = vmatpush2.msra.mxu0 0.0
    %235 = vmatprep.subr.mxu0 0.0
    %236 = vmatpush2.msra.mxu0 0.0
    %237 = vmatprep.subr.mxu0 0.0
    %238 = vmatpush2.msra.mxu0 0.0
    %239 = vmatprep.subr.mxu0 0.0
    %240 = vmatpush2.msra.mxu0 0.0
    %241 = vmatprep.subr.mxu0 0.0
    %242 = vmatpush2.msra.mxu0 0.0
    %243 = vmatprep.subr.mxu0 0.0
    %244 = vmatpush2.msra.mxu0 0.0
    %245 = vmatprep.subr.mxu0 0.0
    %246 = vmatpush2.msra.mxu0 0.0
    %247 = vmatprep.subr.mxu0 0.0
    %248 = vmatpush2.msra.mxu0 0.0
    %249 = vmatprep.subr.mxu0 0.0
    %250 = vmatpush2.msra.mxu0 0.0
    %251 = vmatprep.subr.mxu0 0.0
    %252 = vmatpush2.msra.mxu0 0.0
    %253 = vmatprep.subr.mxu0 0.0
    %254 = vmatpush2.msra.mxu0 0.0
    %255 = vmatprep.subr.mxu0 0.0
    %256 = vmatpush2.msra.mxu0 0.0
    %257 = vmatprep.subr.mxu0 0.0
    %258 = vmatpush2.msra.mxu0 0.0
    %259 = vmatprep.subr.mxu0 0.0
    %260 = vmatpush2.msra.mxu0 0.0
    %261 = vmatprep.subr.mxu0 0.0
    %262 = vmatpush2.msra.mxu0 0.0
    %263 = vmatprep.subr.mxu0 0.0
    %264 = vmatpush2.msra.mxu0 0.0
    %265 = vmatprep.mubr.f32.mxu0 0.0
    %266 = vmatmul.mubr.f32.gmra.mxu0 %v199
    %v267 = vpop.f32.mrf.mxu0
    %v268 = vadd.f32 0.0, %v267
    %v269 = vpop.f32.mrf.mxu0
    %270 = vdwg.mxu0
    %s271 = scalar_lea.vmem [#allocation3], 8
    %v272 = vld [vmem:[%s271] sm:$0xff]
    %274 = vset.pattern.permute.xlu0 0
    %275 = vperm.xlu0 %274, %v186
    %v276 = vpop.permute.xlu0 %275
    %v278 = vmul.f32 %v276, %v272
    %v279 = vadd.f32 %v278, %v268
    %280 = vst.msk [vmem:[%s271] sm:$0xff] %vm152, %v279
    %281 = vst.msk [vmem:[%s178] sm:$0xff] %vm154, %v183
    %v282 = vld [vmem:[%s3] sm:$0x3]
    %v283 = vunpack.c.0.s8 %v282
    %v284 = vcvt.s32.f32 %v283
    %s285 = scalar_lea.vmem %s0, 16
    %v286 = vld [vmem:[%s285] sm:$0xff]
    %s287 = scalar_lea.vmem %s1, 2
    %v288 = vld [vmem:[%s287] sm:$0x1]
    %290 = vset.pattern.permute.xlu0 0
    %291 = vperm.xlu0 %290, %v286
    %v292 = vpop.permute.xlu0 %291
    %v295 = vlaneseq
    %v296 = vshrl.u32 %v295, 7
    %v297 = vsub.s32 0, %v296
    %v298 = vrot.slane %v288, %v297
    %v300 = vadd.f32 %v292, %v298
    %vm301 = vcmp.ge.f32.partialorder %v300, 0.0
    %v302 = vmul.f32 %v300, 0.2
    %v303 = vsel %vm301, %v300, %v302
    %s304 = scalar_lea.vmem [#allocation2], 16
    %v305 = vld [vmem:[%s304] sm:$0xff]
    %v306 = vsel %vm53, %v303, -inf
    %307 = vmax.xlane.f32.xlu0 %v306
    %v308 = vpop.xlane.xlu0 %307
    %v309 = vmax.f32 %v305, %v308
    %v310 = vsub.f32 %v305, %v309
    %v311 = vmul.f32 %v310, 1.442695
    %v312 = vpow.pop %v311
    %314 = vset.pattern.permute.xlu0 0
    %315 = vperm.xlu0 %314, %v309
    %v316 = vpop.permute.xlu0 %315
    %v318 = vsub.f32 %v303, %v316
    %v319 = vmul.f32 %v318, 1.442695
    %v320 = vpow.pop %v319
    %v321 = vmul.f32 %v320, %v284
    %s322 = scalar_lea.vmem %s2, 16
    %v323 = vld [vmem:[%s322] sm:$0xff]
    %v325 = vsel %vm53, %v321, 0
    %327 = vmatprep.subr.mxu0 0.0
    %328 = vmatpush1.msra.mxu0 0.0
    %329 = vmatprep.subr.mxu0 0.0
    %330 = vmatpush1.msra.mxu0 0.0
    %331 = vmatprep.subr.mxu0 0.0
    %332 = vmatpush1.msra.mxu0 0.0
    %333 = vmatprep.subr.mxu0 0.0
    %334 = vmatpush1.msra.mxu0 0.0
    %335 = vmatprep.subr.mxu0 0.0
    %336 = vmatpush1.msra.mxu0 0.0
    %337 = vmatprep.subr.mxu0 0.0
    %338 = vmatpush1.msra.mxu0 0.0
    %339 = vmatprep.subr.mxu0 0.0
    %340 = vmatpush1.msra.mxu0 0.0
    %341 = vmatprep.subr.mxu0 0.0
    %342 = vmatpush1.msra.mxu0 0.0
    %343 = vmatprep.subr.mxu0 0.0
    %344 = vmatpush1.msra.mxu0 0.0
    %345 = vmatprep.subr.mxu0 0.0
    %346 = vmatpush1.msra.mxu0 0.0
    %347 = vmatprep.subr.mxu0 0.0
    %348 = vmatpush1.msra.mxu0 0.0
    %349 = vmatprep.subr.mxu0 0.0
    %350 = vmatpush1.msra.mxu0 0.0
    %351 = vmatprep.subr.mxu0 0.0
    %352 = vmatpush1.msra.mxu0 0.0
    %353 = vmatprep.subr.mxu0 0.0
    %354 = vmatpush1.msra.mxu0 0.0
    %355 = vmatprep.subr.mxu0 0.0
    %356 = vmatpush1.msra.mxu0 0.0
    %357 = vmatprep.subr.mxu0 0.0
    %358 = vmatpush1.msra.mxu0 %v323
    %359 = vmatprep.subr.mxu0 0.0
    %360 = vmatpush2.msra.mxu0 0.0
    %361 = vmatprep.subr.mxu0 0.0
    %362 = vmatpush2.msra.mxu0 0.0
    %363 = vmatprep.subr.mxu0 0.0
    %364 = vmatpush2.msra.mxu0 0.0
    %365 = vmatprep.subr.mxu0 0.0
    %366 = vmatpush2.msra.mxu0 0.0
    %367 = vmatprep.subr.mxu0 0.0
    %368 = vmatpush2.msra.mxu0 0.0
    %369 = vmatprep.subr.mxu0 0.0
    %370 = vmatpush2.msra.mxu0 0.0
    %371 = vmatprep.subr.mxu0 0.0
    %372 = vmatpush2.msra.mxu0 0.0
    %373 = vmatprep.subr.mxu0 0.0
    %374 = vmatpush2.msra.mxu0 0.0
    %375 = vmatprep.subr.mxu0 0.0
    %376 = vmatpush2.msra.mxu0 0.0
    %377 = vmatprep.subr.mxu0 0.0
    %378 = vmatpush2.msra.mxu0 0.0
    %379 = vmatprep.subr.mxu0 0.0
    %380 = vmatpush2.msra.mxu0 0.0
    %381 = vmatprep.subr.mxu0 0.0
    %382 = vmatpush2.msra.mxu0 0.0
    %383 = vmatprep.subr.mxu0 0.0
    %384 = vmatpush2.msra.mxu0 0.0
    %385 = vmatprep.subr.mxu0 0.0
    %386 = vmatpush2.msra.mxu0 0.0
    %387 = vmatprep.subr.mxu0 0.0
    %388 = vmatpush2.msra.mxu0 0.0
    %389 = vmatprep.subr.mxu0 0.0
    %390 = vmatpush2.msra.mxu0 0.0
    %391 = vmatprep.mubr.f32.mxu0 0.0
    %392 = vmatmul.mubr.f32.gmra.mxu0 %v325
    %v393 = vpop.f32.mrf.mxu0
    %v394 = vadd.f32 0.0, %v393
    %v395 = vpop.f32.mrf.mxu0
    %396 = vdwg.mxu0
    %s397 = scalar_lea.vmem [#allocation3], 16
    %v398 = vld [vmem:[%s397] sm:$0xff]
    %400 = vset.pattern.permute.xlu0 0
    %401 = vperm.xlu0 %400, %v312
    %v402 = vpop.permute.xlu0 %401
    %v404 = vmul.f32 %v402, %v398
    %v405 = vadd.f32 %v404, %v394
    %406 = vst.msk [vmem:[%s397] sm:$0xff] %vm152, %v405
    %407 = vst.msk [vmem:[%s304] sm:$0xff] %vm154, %v309
    %v408 = vld [vmem:[%s3] sm:$0x3]
    %v409 = vunpack.c.0.s8 %v408
    %v410 = vcvt.s32.f32 %v409
    %s411 = scalar_lea.vmem %s0, 24
    %v412 = vld [vmem:[%s411] sm:$0xff]
    %s413 = scalar_lea.vmem %s1, 3
    %v414 = vld [vmem:[%s413] sm:$0x1]
    %416 = vset.pattern.permute.xlu0 0
    %417 = vperm.xlu0 %416, %v412
    %v418 = vpop.permute.xlu0 %417
    %v421 = vlaneseq
    %v422 = vshrl.u32 %v421, 7
    %v423 = vsub.s32 0, %v422
    %v424 = vrot.slane %v414, %v423
    %v426 = vadd.f32 %v418, %v424
    %vm427 = vcmp.ge.f32.partialorder %v426, 0.0
    %v428 = vmul.f32 %v426, 0.2
    %v429 = vsel %vm427, %v426, %v428
    %s430 = scalar_lea.vmem [#allocation2], 24
    %v431 = vld [vmem:[%s430] sm:$0xff]
    %v432 = vsel %vm53, %v429, -inf
    %433 = vmax.xlane.f32.xlu0 %v432
    %v434 = vpop.xlane.xlu0 %433
    %v435 = vmax.f32 %v431, %v434
    %v436 = vsub.f32 %v431, %v435
    %v437 = vmul.f32 %v436, 1.442695
    %v438 = vpow.pop %v437
    %440 = vset.pattern.permute.xlu0 0
    %441 = vperm.xlu0 %440, %v435
    %v442 = vpop.permute.xlu0 %441
    %v444 = vsub.f32 %v429, %v442
    %v445 = vmul.f32 %v444, 1.442695
    %v446 = vpow.pop %v445
    %v447 = vmul.f32 %v446, %v410
    %s448 = scalar_lea.vmem %s2, 24
    %v449 = vld [vmem:[%s448] sm:$0xff]
    %v451 = vsel %vm53, %v447, 0
    %453 = vmatprep.subr.mxu0 0.0
    %454 = vmatpush1.msra.mxu0 0.0
    %455 = vmatprep.subr.mxu0 0.0
    %456 = vmatpush1.msra.mxu0 0.0
    %457 = vmatprep.subr.mxu0 0.0
    %458 = vmatpush1.msra.mxu0 0.0
    %459 = vmatprep.subr.mxu0 0.0
    %460 = vmatpush1.msra.mxu0 0.0
    %461 = vmatprep.subr.mxu0 0.0
    %462 = vmatpush1.msra.mxu0 0.0
    %463 = vmatprep.subr.mxu0 0.0
    %464 = vmatpush1.msra.mxu0 0.0
    %465 = vmatprep.subr.mxu0 0.0
    %466 = vmatpush1.msra.mxu0 0.0
    %467 = vmatprep.subr.mxu0 0.0
    %468 = vmatpush1.msra.mxu0 0.0
    %469 = vmatprep.subr.mxu0 0.0
    %470 = vmatpush1.msra.mxu0 0.0
    %471 = vmatprep.subr.mxu0 0.0
    %472 = vmatpush1.msra.mxu0 0.0
    %473 = vmatprep.subr.mxu0 0.0
    %474 = vmatpush1.msra.mxu0 0.0
    %475 = vmatprep.subr.mxu0 0.0
    %476 = vmatpush1.msra.mxu0 0.0
    %477 = vmatprep.subr.mxu0 0.0
    %478 = vmatpush1.msra.mxu0 0.0
    %479 = vmatprep.subr.mxu0 0.0
    %480 = vmatpush1.msra.mxu0 0.0
    %481 = vmatprep.subr.mxu0 0.0
    %482 = vmatpush1.msra.mxu0 0.0
    %483 = vmatprep.subr.mxu0 0.0
    %484 = vmatpush1.msra.mxu0 %v449
    %485 = vmatprep.subr.mxu0 0.0
    %486 = vmatpush2.msra.mxu0 0.0
    %487 = vmatprep.subr.mxu0 0.0
    %488 = vmatpush2.msra.mxu0 0.0
    %489 = vmatprep.subr.mxu0 0.0
    %490 = vmatpush2.msra.mxu0 0.0
    %491 = vmatprep.subr.mxu0 0.0
    %492 = vmatpush2.msra.mxu0 0.0
    %493 = vmatprep.subr.mxu0 0.0
    %494 = vmatpush2.msra.mxu0 0.0
    %495 = vmatprep.subr.mxu0 0.0
    %496 = vmatpush2.msra.mxu0 0.0
    %497 = vmatprep.subr.mxu0 0.0
    %498 = vmatpush2.msra.mxu0 0.0
    %499 = vmatprep.subr.mxu0 0.0
    %500 = vmatpush2.msra.mxu0 0.0
    %501 = vmatprep.subr.mxu0 0.0
    %502 = vmatpush2.msra.mxu0 0.0
    %503 = vmatprep.subr.mxu0 0.0
    %504 = vmatpush2.msra.mxu0 0.0
    %505 = vmatprep.subr.mxu0 0.0
    %506 = vmatpush2.msra.mxu0 0.0
    %507 = vmatprep.subr.mxu0 0.0
    %508 = vmatpush2.msra.mxu0 0.0
    %509 = vmatprep.subr.mxu0 0.0
    %510 = vmatpush2.msra.mxu0 0.0
    %511 = vmatprep.subr.mxu0 0.0
    %512 = vmatpush2.msra.mxu0 0.0
    %513 = vmatprep.subr.mxu0 0.0
    %514 = vmatpush2.msra.mxu0 0.0
    %515 = vmatprep.subr.mxu0 0.0
    %516 = vmatpush2.msra.mxu0 0.0
    %517 = vmatprep.mubr.f32.mxu0 0.0
    %518 = vmatmul.mubr.f32.gmra.mxu0 %v451
    %v519 = vpop.f32.mrf.mxu0
    %v520 = vadd.f32 0.0, %v519
    %v521 = vpop.f32.mrf.mxu0
    %522 = vdwg.mxu0
    %s523 = scalar_lea.vmem [#allocation3], 24
    %v524 = vld [vmem:[%s523] sm:$0xff]
    %526 = vset.pattern.permute.xlu0 0
    %527 = vperm.xlu0 %526, %v438
    %v528 = vpop.permute.xlu0 %527
    %v530 = vmul.f32 %v528, %v524
    %v531 = vadd.f32 %v530, %v520
    %532 = vst.msk [vmem:[%s523] sm:$0xff] %vm152, %v531
    %533 = vst.msk [vmem:[%s430] sm:$0xff] %vm154, %v435
    // Predicated region
    $region22: #{tpu_custom_call.1} parent=1 // pred_check
      %p534 = pneg %p18
    $region23: #{tpu_custom_call.1} parent=1 // pred_check_branch
      %536 = sbr.rel (%p534) target = $region25
    $region24: #{tpu_custom_call.1} parent=1 // pred_region
      %v537 = vld [vmem:[#allocation3] sm:$0xff]
      %v538 = vmax.f32 %v537, 1e-20
      %v539 = vrcp.pop %v538
      %v540 = vmul.f32 %v538, %v539
      %v541 = vsub.f32 2.0, %v540
      %v542 = vmul.f32 %v539, %v541
      %544 = vset.pattern.permute.xlu0 8
      %545 = vperm.xlu0 %544, %v542
      %v546 = vpop.permute.xlu0 %545
      %v548 = vmul.f32 %v537, %v546
      %v549 = vld [vmem:[%s271] sm:$0xff]
      %v550 = vmax.f32 %v549, 1e-20
      %v551 = vrcp.pop %v550
      %v552 = vmul.f32 %v550, %v551
      %v553 = vsub.f32 2.0, %v552
      %v554 = vmul.f32 %v551, %v553
      %556 = vset.pattern.permute.xlu0 8
      %557 = vperm.xlu0 %556, %v554
      %v558 = vpop.permute.xlu0 %557
      %v560 = vmul.f32 %v549, %v558
      %v561 = vld [vmem:[%s397] sm:$0xff]
      %v562 = vmax.f32 %v561, 1e-20
      %v563 = vrcp.pop %v562
      %v564 = vmul.f32 %v562, %v563
      %v565 = vsub.f32 2.0, %v564
      %v566 = vmul.f32 %v563, %v565
      %568 = vset.pattern.permute.xlu0 8
      %569 = vperm.xlu0 %568, %v566
      %v570 = vpop.permute.xlu0 %569
      %v572 = vmul.f32 %v561, %v570
      %v573 = vld [vmem:[%s523] sm:$0xff]
      %v574 = vmax.f32 %v573, 1e-20
      %v575 = vrcp.pop %v574
      %v576 = vmul.f32 %v574, %v575
      %v577 = vsub.f32 2.0, %v576
      %v578 = vmul.f32 %v575, %v577
      %580 = vset.pattern.permute.xlu0 8
      %581 = vperm.xlu0 %580, %v578
      %v582 = vpop.permute.xlu0 %581
      %v584 = vmul.f32 %v573, %v582
      %586 = vrot.lane.b32.xlu0 %v560, 8
      %v587 = vpop.permute.xlu0 %586
      %590 = vrot.lane.b32.xlu0 %v572, 16
      %v591 = vpop.permute.xlu0 %590
      %594 = vrot.lane.b32.xlu0 %v584, 24
      %v595 = vpop.permute.xlu0 %594
      %v597 = vsel %vm53, %v548, %v587
      %vm598 = vcmask 130048
      %v599 = vsel %vm598, %v597, %v591
      %vm600 = vcmask 195584
      %v601 = vsel %vm600, %v599, %v595
      %vm602 = vcmask 261120
      %603 = vst.msk [vmem:[#allocation4] sm:$0xff] %vm602, %v601
    $region25: #{tpu_custom_call.1} parent=1 // pred_fallthru
      _
    // Predicated region
    $region26: #{tpu_custom_call.1} parent=1 // pred_check
      _
    $region27: #{tpu_custom_call.1} parent=1 // pred_check_branch
      %605 = sbr.rel (0) target = $region29
    $region28: #{tpu_custom_call.1} parent=1 // pred_region
      %s607 = ssub.s32 128, 128
      %608 = vsyncadd [#allocation5], %s607
      %s610 = sshll.u32 [#allocation4], 4
      %s611 = int_to_ptr.vmem [resolvable:$true] %s610
      %613 = dma.vmem_to_hbm [thread:$0]  %s611, 128, %s4, [#allocation5]
    $region29: #{tpu_custom_call.1} parent=1 // pred_fallthru
      _
    // Predicated region
    $region30: #{tpu_custom_call.1} parent=1 // pred_check
      _
    $region31: #{tpu_custom_call.1} parent=1 // pred_check_branch
      %615 = sbr.rel (0) target = $region33
    $region32: #{tpu_custom_call.1} parent=1 // pred_region
      %616 = dma.done [#allocation5], 128
    $region33: #{tpu_custom_call.1} parent=1 // pred_fallthru
      _
    %617 = vsyncpa [#allocation5], 1

</llo_original>
